<compile_context>
chip_gen: v7x
topology: tpu7x:2x2x1
jax: 0.10.0
libtpu: 0.0.40
codegen_flags: <defaults>
</compile_context>

<pallas_src>
import math

import jax
import jax.numpy as jnp
from jax.experimental import pallas as pl
from jax.experimental.pallas import tpu as pltpu


def _round_up(x, m):
    return ((x + m - 1) // m) * m


def _tensorcores_per_chip():
    """2 on dual-TensorCore chips (v7x), else 1.  Safe fallback: 1."""
    try:
        kind = jax.devices()[0].device_kind.lower()
    except Exception:
        return 1
    return 2 if ("v7" in kind or "7x" in kind) else 1


def edge_embed_kernel(attr_ref, agg_ref, w1_ref, w2_ref, b_ref, o_ref):
    # result = relu( agg @ W1 + attr @ W2 + (b1 + b2) )   (block-diag weights)
    acc = jnp.dot(agg_ref[...], w1_ref[...], preferred_element_type=jnp.float32)
    acc += jnp.dot(attr_ref[...], w2_ref[...], preferred_element_type=jnp.float32)
    o_ref[...] = jnp.maximum(acc + b_ref[...], 0.0).astype(o_ref.dtype)


def edge_embedding_f3_4(edge_attr, edge_neigh_agg, w1, b1, w2, b2, *,
                        tile_m=2048):
    """edge_attr / edge_neigh_agg: [N, C_in]; w: [C_in, C_out] (transpose of
    PyTorch nn.Linear's [out, in]); b: [1, C_out] or [C_out]. Returns [N, C_out]."""
    N, C_in = edge_attr.shape
    C_out = w1.shape[1]
    dtype = edge_attr.dtype

    b1 = b1.reshape(1, C_out)
    b2 = b2.reshape(1, C_out)

    # Row-pack factor so the kernel's output last dim is a full 128 lanes.
    if 0 < C_out < 128 and 128 % C_out == 0:
        pack = 128 // C_out
    else:
        pack = 1

    # Pad only up to a multiple of `pack` (at most pack-1 rows; no-op when
    # N % pack == 0).  Tile-granularity padding is handled by Pallas'
    # partial-block masking, so no extra full HBM pass over the inputs.
    N_pack = _round_up(N, pack)
    if N_pack != N:
        pad = N_pack - N
        edge_attr = jnp.pad(edge_attr, ((0, pad), (0, 0)))
        edge_neigh_agg = jnp.pad(edge_neigh_agg, ((0, pad), (0, 0)))
    M = N_pack // pack

    # Free (row-major) reshapes into the lane-dense packed layout.
    attr_p = edge_attr.reshape(M, pack * C_in)
    agg_p = edge_neigh_agg.reshape(M, pack * C_in)

    # Block-diagonal weights [pack*C_in, pack*C_out] and combined bias
    # (tiny one-time transform; constant-folds under jit with fixed params).
    eye = jnp.eye(pack, dtype=w1.dtype)
    w1_blk = jnp.kron(eye, w1)
    w2_blk = jnp.kron(eye, w2)
    b_comb = jnp.tile(b1 + b2, (1, pack))              # [1, pack*C_out]

    K = pack * C_in
    Co = pack * C_out

    # Tile selection: biggest tile that fits the problem (per-step overhead
    # ~0.35us; larger DMAs sit closer to the HBM roofline).  Single-TC chips
    # (v5e/v6e) never split a tile that already fits.  Dual-TC v7x shrinks
    # only enough to give each core >= 2 pipelined grid steps, floor 512 rows.
    tile_m = min(tile_m, max(8, _round_up(M, 8)))
    if _tensorcores_per_chip() >= 2:
        while tile_m >= 1024 and tile_m < M and pl.cdiv(M, tile_m) < 4:
            tile_m //= 2

    grid = (pl.cdiv(M, tile_m),)

    row_in_spec = pl.BlockSpec((tile_m, K), lambda i: (i, 0))
    w_spec = pl.BlockSpec((K, Co), lambda i: (0, 0))
    b_spec = pl.BlockSpec((1, Co), lambda i: (0, 0))
    row_out_spec = pl.BlockSpec((tile_m, Co), lambda i: (i, 0))

    # Scheduling hint with the traffic / MXU flops actually issued
    # (block-diagonal zeros included in flops).
    cost = pl.CostEstimate(
        flops=2 * 2 * M * K * Co,
        transcendentals=0,
        bytes_accessed=4 * (M * (2 * K + Co) + 2 * K * Co + Co),
    )

    # Double-buffered VMEM footprint + generous headroom (fits all generations:
    # v5e/v6e have 128 MiB physical VMEM, v7x has 64 MiB per TensorCore).
    vmem_bytes = 4 * (2 * (2 * tile_m * K)      # two input tiles, x2 buffers
                      + 2 * tile_m * Co         # output tile, x2 buffers
                      + 2 * 2 * K * Co          # two weight tiles, x2 buffers
                      + 2 * 8 * Co)             # bias tile (sublane-padded)
    vmem_limit = int(min(64 * 1024 * 1024, max(32 * 1024 * 1024, 2 * vmem_bytes)))

    out_p = pl.pallas_call(
        edge_embed_kernel,
        out_shape=jax.ShapeDtypeStruct((M, Co), dtype),
        grid_spec=pltpu.PrefetchScalarGridSpec(
            num_scalar_prefetch=0,
            grid=grid,
            in_specs=[row_in_spec,   # edge_attr       (packed)
                      row_in_spec,   # edge_neigh_agg  (packed)
                      w_spec,        # w1 (block-diag)
                      w_spec,        # w2 (block-diag)
                      b_spec],       # combined bias
            out_specs=row_out_spec,
        ),
        compiler_params=pltpu.CompilerParams(
            dimension_semantics=("parallel",),
            vmem_limit_bytes=vmem_limit),
        cost_estimate=cost,
    )(attr_p, agg_p, w1_blk, w2_blk, b_comb)

    # Unpack lane-dense rows back to [N_pack, C_out] (free reshape); slice
    # only in the rare case N was not a multiple of `pack`.
    out = out_p.reshape(N_pack, C_out)
    return out if N_pack == N else out[:N]


def reference(edge_attr, edge_neigh_agg, w1, b1, w2, b2):
    out = edge_neigh_agg @ w1 + b1 + edge_attr @ w2 + b2
    return jnp.maximum(out, 0.0)


if __name__ == "__main__":
    # Shapes consistent with the module: N edges, input_channels=32,
    # output_channels=64, act = ReLU.
    N, C_in, C_out = 256, 32, 64
    key = jax.random.PRNGKey(0)
    k_attr, k_agg, k_w1, k_b1, k_w2, k_b2 = jax.random.split(key, 6)

    # Deterministic parameter init (nn.Linear(input_c, output_c) shapes),
    # stored as [C_in, C_out] (transpose of PyTorch's [out, in]).
    bound = 1.0 / math.sqrt(C_in)
    w1 = jax.random.uniform(k_w1, (C_in, C_out), jnp.float32, -bound, bound)
    b1 = jax.random.uniform(k_b1, (1, C_out), jnp.float32, -bound, bound)
    w2 = jax.random.uniform(k_w2, (C_in, C_out), jnp.float32, -bound, bound)
    b2 = jax.random.uniform(k_b2, (1, C_out), jnp.float32, -bound, bound)

    edge_attr = jax.random.normal(k_attr, (N, C_in), dtype=jnp.float32)
    edge_neigh_agg = jax.random.normal(k_agg, (N, C_in), dtype=jnp.float32)

    # 1) Even N (no padding at all, single tile).
    out = edge_embedding_f3_4(edge_attr, edge_neigh_agg, w1, b1, w2, b2)
    out = jax.block_until_ready(out)
    ref = reference(edge_attr, edge_neigh_agg, w1, b1, w2, b2)
    assert out.shape == (N, C_out)
    assert jnp.allclose(out, ref, atol=1e-5, rtol=1e-5)

    # 2) Odd N (exercises the pack-1-row padding + final slice path).
    N2 = 201
    out2 = edge_embedding_f3_4(edge_attr[:N2], edge_neigh_agg[:N2],
                               w1, b1, w2, b2)
    out2 = jax.block_until_ready(out2)
    assert out2.shape == (N2, C_out)
    assert jnp.allclose(out2, ref[:N2], atol=1e-5, rtol=1e-5)

    # 3) Multi-step grid with a partial (masked) final block.
    N3 = 2000
    k_a3, k_g3 = jax.random.split(jax.random.PRNGKey(1))
    attr3 = jax.random.normal(k_a3, (N3, C_in), dtype=jnp.float32)
    agg3 = jax.random.normal(k_g3, (N3, C_in), dtype=jnp.float32)
    out3 = edge_embedding_f3_4(attr3, agg3, w1, b1, w2, b2, tile_m=512)
    out3 = jax.block_until_ready(out3)
    ref3 = reference(attr3, agg3, w1, b1, w2, b2)
    assert out3.shape == (N3, C_out)
    assert jnp.allclose(out3, ref3, atol=1e-5, rtol=1e-5)

    print("KERNEL_OK")
</pallas_src>

<mosaic_0001>
module attributes {stable_mosaic.version = 11 : i64} {
  func.func @edge_embed_kernel(%arg0: i32, %arg1: memref<128x64xf32, #tpu.memory_space<vmem>>, %arg2: memref<128x64xf32, #tpu.memory_space<vmem>>, %arg3: memref<64x128xf32, #tpu.memory_space<vmem>>, %arg4: memref<64x128xf32, #tpu.memory_space<vmem>>, %arg5: memref<1x128xf32, #tpu.memory_space<vmem>>, %arg6: memref<128x128xf32, #tpu.memory_space<vmem>>) attributes {dimension_semantics = [#tpu.dimension_semantics<parallel>], iteration_bounds = array<i64: 1>, scalar_prefetch = 0 : i64, scratch_operands = 0 : i64, tpu.core_type = #tpu.core_type<tc>, window_params = [{transform_indices = @transform_0, window_bounds = array<i64: 128, 64>}, {transform_indices = @transform_1, window_bounds = array<i64: 128, 64>}, {pipeline_mode = #tpu.pipeline_mode<synchronous>, transform_indices = @transform_2, window_bounds = array<i64: 64, 128>}, {pipeline_mode = #tpu.pipeline_mode<synchronous>, transform_indices = @transform_3, window_bounds = array<i64: 64, 128>}, {pipeline_mode = #tpu.pipeline_mode<synchronous>, transform_indices = @transform_4, window_bounds = array<i64: 1, 128>}, {transform_indices = @transform_5, window_bounds = array<i64: 128, 128>}]} {
    %c0 = arith.constant 0 : index
    %c0_0 = arith.constant 0 : index
    %0 = vector.load %arg2[%c0, %c0_0] : memref<128x64xf32, #tpu.memory_space<vmem>>, vector<128x64xf32>
    %c0_1 = arith.constant 0 : index
    %c0_2 = arith.constant 0 : index
    %1 = vector.load %arg3[%c0_1, %c0_2] : memref<64x128xf32, #tpu.memory_space<vmem>>, vector<64x128xf32>
    %cst = arith.constant dense<0.000000e+00> : vector<128x128xf32>
    %2 = tpu.matmul %0, %1, %cst {dimension_numbers = #tpu.dot_dimension_numbers<[1], [0], [0], [1], [0, 0, 1, 1], [], []>} : vector<128x64xf32>, vector<64x128xf32>, vector<128x128xf32> -> vector<128x128xf32>
    %c0_3 = arith.constant 0 : index
    %c0_4 = arith.constant 0 : index
    %3 = vector.load %arg1[%c0_3, %c0_4] : memref<128x64xf32, #tpu.memory_space<vmem>>, vector<128x64xf32>
    %c0_5 = arith.constant 0 : index
    %c0_6 = arith.constant 0 : index
    %4 = vector.load %arg4[%c0_5, %c0_6] : memref<64x128xf32, #tpu.memory_space<vmem>>, vector<64x128xf32>
    %cst_7 = arith.constant dense<0.000000e+00> : vector<128x128xf32>
    %5 = tpu.matmul %3, %4, %cst_7 {dimension_numbers = #tpu.dot_dimension_numbers<[1], [0], [0], [1], [0, 0, 1, 1], [], []>} : vector<128x64xf32>, vector<64x128xf32>, vector<128x128xf32> -> vector<128x128xf32>
    %6 = arith.addf %2, %5 : vector<128x128xf32>
    %c0_8 = arith.constant 0 : index
    %c0_9 = arith.constant 0 : index
    %7 = vector.load %arg5[%c0_8, %c0_9] : memref<1x128xf32, #tpu.memory_space<vmem>>, vector<1x128xf32>
    %8 = vector.broadcast %7 : vector<1x128xf32> to vector<128x128xf32>
    %9 = arith.addf %6, %8 : vector<128x128xf32>
    %cst_10 = arith.constant 0.000000e+00 : f32
    %10 = vector.broadcast %cst_10 : f32 to vector<128x128xf32>
    %11 = arith.maximumf %9, %10 : vector<128x128xf32>
    %c0_11 = arith.constant 0 : index
    %c0_12 = arith.constant 0 : index
    %12 = vector.load %arg6[%c0_11, %c0_12] : memref<128x128xf32, #tpu.memory_space<vmem>>, vector<128x128xf32>
    tpu.vector_store %arg6[%c0_11, %c0_12], %11 {strides = array<i32>} : memref<128x128xf32, #tpu.memory_space<vmem>>, vector<128x128xf32>,
    return
  }
  func.func @transform_0(%arg0: i32) -> (i32, i32) {
    %c0_i32 = arith.constant 0 : i32
    %c0_i32_0 = arith.constant 0 : i32
    return %arg0, %c0_i32 : i32, i32
  }
  func.func @transform_1(%arg0: i32) -> (i32, i32) {
    %c0_i32 = arith.constant 0 : i32
    %c0_i32_0 = arith.constant 0 : i32
    return %arg0, %c0_i32 : i32, i32
  }
  func.func @transform_2(%arg0: i32) -> (i32, i32) {
    %c0_i32 = arith.constant 0 : i32
    %c0_i32_0 = arith.constant 0 : i32
    %c0_i32_1 = arith.constant 0 : i32
    return %c0_i32, %c0_i32_0 : i32, i32
  }
  func.func @transform_3(%arg0: i32) -> (i32, i32) {
    %c0_i32 = arith.constant 0 : i32
    %c0_i32_0 = arith.constant 0 : i32
    %c0_i32_1 = arith.constant 0 : i32
    return %c0_i32, %c0_i32_0 : i32, i32
  }
  func.func @transform_4(%arg0: i32) -> (i32, i32) {
    %c0_i32 = arith.constant 0 : i32
    %c0_i32_0 = arith.constant 0 : i32
    %c0_i32_1 = arith.constant 0 : i32
    return %c0_i32, %c0_i32_0 : i32, i32
  }
  func.func @transform_5(%arg0: i32) -> (i32, i32) {
    %c0_i32 = arith.constant 0 : i32
    %c0_i32_0 = arith.constant 0 : i32
    return %arg0, %c0_i32 : i32, i32
  }
}

</mosaic_0001>

<llo_original>
// kernel: tpu_custom_call.1
$region0: #{tpu_custom_call.1}
  #allocation0 [shape = 'u32[]', space=smem, size = 0x4, offset = 0x4, fixed_abs, tag = 'smem constant byte address 0x4 - core index']
  #allocation1 [shape = 'u32[144,128]{1,0:T(1,128)}', space=vmem, size = 0x12000, scoped, tag = 'internal scratch']
  %s0 = inlined_call_operand.vmem [shape: f32[128,64], index: 0, kind: input, shape index: {}]
  %s1 = inlined_call_operand.vmem [shape: f32[128,64], index: 1, kind: input, shape index: {}]
  %s2 = inlined_call_operand.vmem [shape: f32[64,128], index: 2, kind: input, shape index: {}]
  %s3 = inlined_call_operand.vmem [shape: f32[64,128], index: 3, kind: input, shape index: {}]
  %s4 = inlined_call_operand.vmem [shape: f32[1,128], index: 4, kind: input, shape index: {}]
  %s5 = inlined_call_operand.hbm [shape: f32[128,128], index: 5, kind: output, shape index: {}]
  %s6 = sld [smem:[#allocation0]]
  $region30: #{tpu_custom_call.1} parent=0
    _
  %s8 = ssub.s32 1, %s6
  %s9 = scalar_select 0, %s8, %s6
  $region1: #{tpu_custom_call.1} parent=0
    #allocation2 [shape = 'u8[65536]{0}', space=vmem, size = 0x10000, scoped, tag = 'output window, operand 0, single buffered']
    #allocation3 [shape = 's32[1]{0}', space=sflag, size = 0x4, scoped, tag = 'scoped memory for tpu_custom_call.1']
    %10 = vsyncpa [#allocation3], 0
    // Predicated region
    $region2: #{tpu_custom_call.1} parent=1 // pred_check
      _
    $region3: #{tpu_custom_call.1} parent=1 // pred_check_branch
      %12 = sbr.rel (0) target = $region5
    $region4: #{tpu_custom_call.1} parent=1 // pred_region
      _
    $region5: #{tpu_custom_call.1} parent=1 // pred_fallthru
      _
    // Predicated region
    $region6: #{tpu_custom_call.1} parent=1 // pred_check
      _
    $region7: #{tpu_custom_call.1} parent=1 // pred_check_branch
      %14 = sbr.rel (0) target = $region9
    $region8: #{tpu_custom_call.1} parent=1 // pred_region
      _
    $region9: #{tpu_custom_call.1} parent=1 // pred_fallthru
      _
    // Predicated region
    $region10: #{tpu_custom_call.1} parent=1 // pred_check
      _
    $region11: #{tpu_custom_call.1} parent=1 // pred_check_branch
      %16 = sbr.rel (0) target = $region13
    $region12: #{tpu_custom_call.1} parent=1 // pred_region
      _
    $region13: #{tpu_custom_call.1} parent=1 // pred_fallthru
      _
    // Predicated region
    $region14: #{tpu_custom_call.1} parent=1 // pred_check
      _
    $region15: #{tpu_custom_call.1} parent=1 // pred_check_branch
      %18 = sbr.rel (0) target = $region17
    $region16: #{tpu_custom_call.1} parent=1 // pred_region
      _
    $region17: #{tpu_custom_call.1} parent=1 // pred_fallthru
      _
    // Predicated region
    $region18: #{tpu_custom_call.1} parent=1 // pred_check
      _
    $region19: #{tpu_custom_call.1} parent=1 // pred_check_branch
      %20 = sbr.rel (0) target = $region21
    $region20: #{tpu_custom_call.1} parent=1 // pred_region
      _
    $region21: #{tpu_custom_call.1} parent=1 // pred_fallthru
      _
    %v21 = vld [vmem:[%s1] sm:$0xff]
    %v22 = vld [vmem:[%s1 + $0x8] sm:$0xff]
    %v23 = vld [vmem:[%s1 + $0x10] sm:$0xff]
    %v24 = vld [vmem:[%s1 + $0x18] sm:$0xff]
    %v25 = vld [vmem:[%s1 + $0x20] sm:$0xff]
    %v26 = vld [vmem:[%s1 + $0x28] sm:$0xff]
    %v27 = vld [vmem:[%s1 + $0x30] sm:$0xff]
    %v28 = vld [vmem:[%s1 + $0x38] sm:$0xff]
    %v29 = vld [vmem:[%s1 + $0x40] sm:$0xff]
    %v30 = vld [vmem:[%s1 + $0x48] sm:$0xff]
    %v31 = vld [vmem:[%s1 + $0x50] sm:$0xff]
    %v32 = vld [vmem:[%s1 + $0x58] sm:$0xff]
    %v33 = vld [vmem:[%s1 + $0x60] sm:$0xff]
    %v34 = vld [vmem:[%s1 + $0x68] sm:$0xff]
    %v35 = vld [vmem:[%s1 + $0x70] sm:$0xff]
    %v36 = vld [vmem:[%s1 + $0x78] sm:$0xff]
    %v37 = vld [vmem:[%s2] sm:$0xff]
    %v38 = vld [vmem:[%s2 + $0x8] sm:$0xff]
    %v39 = vld [vmem:[%s2 + $0x10] sm:$0xff]
    %v40 = vld [vmem:[%s2 + $0x18] sm:$0xff]
    %v41 = vld [vmem:[%s2 + $0x20] sm:$0xff]
    %v42 = vld [vmem:[%s2 + $0x28] sm:$0xff]
    %v43 = vld [vmem:[%s2 + $0x30] sm:$0xff]
    %v44 = vld [vmem:[%s2 + $0x38] sm:$0xff]
    %v45 = vld [vmem:[%s0] sm:$0xff]
    %v46 = vld [vmem:[%s0 + $0x8] sm:$0xff]
    %v47 = vld [vmem:[%s0 + $0x10] sm:$0xff]
    %v48 = vld [vmem:[%s0 + $0x18] sm:$0xff]
    %v49 = vld [vmem:[%s0 + $0x20] sm:$0xff]
    %v50 = vld [vmem:[%s0 + $0x28] sm:$0xff]
    %v51 = vld [vmem:[%s0 + $0x30] sm:$0xff]
    %v52 = vld [vmem:[%s0 + $0x38] sm:$0xff]
    %v53 = vld [vmem:[%s0 + $0x40] sm:$0xff]
    %v54 = vld [vmem:[%s0 + $0x48] sm:$0xff]
    %v55 = vld [vmem:[%s0 + $0x50] sm:$0xff]
    %v56 = vld [vmem:[%s0 + $0x58] sm:$0xff]
    %v57 = vld [vmem:[%s0 + $0x60] sm:$0xff]
    %v58 = vld [vmem:[%s0 + $0x68] sm:$0xff]
    %v59 = vld [vmem:[%s0 + $0x70] sm:$0xff]
    %v60 = vld [vmem:[%s0 + $0x78] sm:$0xff]
    %v61 = vld [vmem:[%s3] sm:$0xff]
    %v62 = vld [vmem:[%s3 + $0x8] sm:$0xff]
    %v63 = vld [vmem:[%s3 + $0x10] sm:$0xff]
    %v64 = vld [vmem:[%s3 + $0x18] sm:$0xff]
    %v65 = vld [vmem:[%s3 + $0x20] sm:$0xff]
    %v66 = vld [vmem:[%s3 + $0x28] sm:$0xff]
    %v67 = vld [vmem:[%s3 + $0x30] sm:$0xff]
    %v68 = vld [vmem:[%s3 + $0x38] sm:$0xff]
    %vm69 = vcmask 523264
    %v71 = vsel %vm69, %v45, 0
    %v74 = vsel %vm69, %v46, 0
    %v77 = vsel %vm69, %v47, 0
    %v80 = vsel %vm69, %v48, 0
    %v83 = vsel %vm69, %v49, 0
    %v86 = vsel %vm69, %v50, 0
    %v89 = vsel %vm69, %v51, 0
    %v92 = vsel %vm69, %v52, 0
    %v95 = vsel %vm69, %v53, 0
    %v98 = vsel %vm69, %v54, 0
    %v101 = vsel %vm69, %v55, 0
    %v104 = vsel %vm69, %v56, 0
    %v107 = vsel %vm69, %v57, 0
    %v110 = vsel %vm69, %v58, 0
    %v113 = vsel %vm69, %v59, 0
    %v116 = vsel %vm69, %v60, 0
    %118 = vmatprep.subr.mxu0 0.0
    %119 = vmatpush1.msra.mxu0 %v61
    %120 = vmatprep.subr.mxu0 0.0
    %121 = vmatpush1.msra.mxu0 %v62
    %122 = vmatprep.subr.mxu0 0.0
    %123 = vmatpush1.msra.mxu0 %v63
    %124 = vmatprep.subr.mxu0 0.0
    %125 = vmatpush1.msra.mxu0 %v64
    %126 = vmatprep.subr.mxu0 0.0
    %127 = vmatpush1.msra.mxu0 %v65
    %128 = vmatprep.subr.mxu0 0.0
    %129 = vmatpush1.msra.mxu0 %v66
    %130 = vmatprep.subr.mxu0 0.0
    %131 = vmatpush1.msra.mxu0 %v67
    %132 = vmatprep.subr.mxu0 0.0
    %133 = vmatpush1.msra.mxu0 %v68
    %134 = vmatprep.subr.mxu0 0.0
    %135 = vmatpush1.msra.mxu0 0.0
    %136 = vmatprep.subr.mxu0 0.0
    %137 = vmatpush1.msra.mxu0 0.0
    %138 = vmatprep.subr.mxu0 0.0
    %139 = vmatpush1.msra.mxu0 0.0
    %140 = vmatprep.subr.mxu0 0.0
    %141 = vmatpush1.msra.mxu0 0.0
    %142 = vmatprep.subr.mxu0 0.0
    %143 = vmatpush1.msra.mxu0 0.0
    %144 = vmatprep.subr.mxu0 0.0
    %145 = vmatpush1.msra.mxu0 0.0
    %146 = vmatprep.subr.mxu0 0.0
    %147 = vmatpush1.msra.mxu0 0.0
    %148 = vmatprep.subr.mxu0 0.0
    %149 = vmatpush1.msra.mxu0 0.0
    %150 = vmatprep.subr.mxu0 0.0
    %151 = vmatpush1.msra.mxu0 0.0
    %152 = vmatprep.subr.mxu0 0.0
    %153 = vmatpush1.msra.mxu0 0.0
    %154 = vmatprep.subr.mxu0 0.0
    %155 = vmatpush1.msra.mxu0 0.0
    %156 = vmatprep.subr.mxu0 0.0
    %157 = vmatpush1.msra.mxu0 0.0
    %158 = vmatprep.subr.mxu0 0.0
    %159 = vmatpush1.msra.mxu0 0.0
    %160 = vmatprep.subr.mxu0 0.0
    %161 = vmatpush1.msra.mxu0 0.0
    %162 = vmatprep.subr.mxu0 0.0
    %163 = vmatpush1.msra.mxu0 0.0
    %164 = vmatprep.subr.mxu0 0.0
    %165 = vmatpush1.msra.mxu0 0.0
    %166 = vmatprep.subr.mxu0 0.0
    %167 = vmatpush1.msra.mxu0 0.0
    %168 = vmatprep.subr.mxu0 0.0
    %169 = vmatpush1.msra.mxu0 0.0
    %170 = vmatprep.subr.mxu0 0.0
    %171 = vmatpush1.msra.mxu0 0.0
    %172 = vmatprep.subr.mxu0 0.0
    %173 = vmatpush1.msra.mxu0 0.0
    %174 = vmatprep.subr.mxu0 0.0
    %175 = vmatpush1.msra.mxu0 0.0
    %176 = vmatprep.subr.mxu0 0.0
    %177 = vmatpush1.msra.mxu0 0.0
    %178 = vmatprep.subr.mxu0 0.0
    %179 = vmatpush1.msra.mxu0 0.0
    %180 = vmatprep.subr.mxu0 0.0
    %181 = vmatpush1.msra.mxu0 0.0
    %182 = vmatprep.mubr.f32.mxu0 0.0
    %183 = vmatmul.mubr.f32.gmra.mrb[0].mxu0 %v71
    %v184 = vpop.f32.mrb[0].mxu0
    %v185 = vadd.f32 0.0, %v184
    %v186 = vpop.f32.mrb[0].mxu0
    %187 = vmatprep.mubr.f32.mxu0 0.0
    %188 = vmatmul.mubr.f32.gmra.mrb[0].mxu0 %v74
    %v189 = vpop.f32.mrb[0].mxu0
    %v190 = vadd.f32 0.0, %v189
    %v191 = vpop.f32.mrb[0].mxu0
    %192 = vmatprep.mubr.f32.mxu0 0.0
    %193 = vmatmul.mubr.f32.gmra.mrb[0].mxu0 %v77
    %v194 = vpop.f32.mrb[0].mxu0
    %v195 = vadd.f32 0.0, %v194
    %v196 = vpop.f32.mrb[0].mxu0
    %197 = vmatprep.mubr.f32.mxu0 0.0
    %198 = vmatmul.mubr.f32.gmra.mrb[0].mxu0 %v80
    %v199 = vpop.f32.mrb[0].mxu0
    %v200 = vadd.f32 0.0, %v199
    %v201 = vpop.f32.mrb[0].mxu0
    %202 = vmatprep.mubr.f32.mxu0 0.0
    %203 = vmatmul.mubr.f32.gmra.mrb[0].mxu0 %v83
    %v204 = vpop.f32.mrb[0].mxu0
    %v205 = vadd.f32 0.0, %v204
    %v206 = vpop.f32.mrb[0].mxu0
    %207 = vmatprep.mubr.f32.mxu0 0.0
    %208 = vmatmul.mubr.f32.gmra.mrb[0].mxu0 %v86
    %v209 = vpop.f32.mrb[0].mxu0
    %v210 = vadd.f32 0.0, %v209
    %v211 = vpop.f32.mrb[0].mxu0
    %212 = vmatprep.mubr.f32.mxu0 0.0
    %213 = vmatmul.mubr.f32.gmra.mrb[0].mxu0 %v89
    %v214 = vpop.f32.mrb[0].mxu0
    %v215 = vadd.f32 0.0, %v214
    %v216 = vpop.f32.mrb[0].mxu0
    %217 = vmatprep.mubr.f32.mxu0 0.0
    %218 = vmatmul.mubr.f32.gmra.mrb[0].mxu0 %v92
    %v219 = vpop.f32.mrb[0].mxu0
    %v220 = vadd.f32 0.0, %v219
    %v221 = vpop.f32.mrb[0].mxu0
    %222 = vmatprep.mubr.f32.mxu0 0.0
    %223 = vmatmul.mubr.f32.gmra.mrb[0].mxu0 %v95
    %v224 = vpop.f32.mrb[0].mxu0
    %v225 = vadd.f32 0.0, %v224
    %v226 = vpop.f32.mrb[0].mxu0
    %227 = vmatprep.mubr.f32.mxu0 0.0
    %228 = vmatmul.mubr.f32.gmra.mrb[0].mxu0 %v98
    %v229 = vpop.f32.mrb[0].mxu0
    %v230 = vadd.f32 0.0, %v229
    %v231 = vpop.f32.mrb[0].mxu0
    %232 = vmatprep.mubr.f32.mxu0 0.0
    %233 = vmatmul.mubr.f32.gmra.mrb[0].mxu0 %v101
    %v234 = vpop.f32.mrb[0].mxu0
    %v235 = vadd.f32 0.0, %v234
    %v236 = vpop.f32.mrb[0].mxu0
    %237 = vmatprep.mubr.f32.mxu0 0.0
    %238 = vmatmul.mubr.f32.gmra.mrb[0].mxu0 %v104
    %v239 = vpop.f32.mrb[0].mxu0
    %v240 = vadd.f32 0.0, %v239
    %v241 = vpop.f32.mrb[0].mxu0
    %242 = vmatprep.mubr.f32.mxu0 0.0
    %243 = vmatmul.mubr.f32.gmra.mrb[0].mxu0 %v107
    %v244 = vpop.f32.mrb[0].mxu0
    %v245 = vadd.f32 0.0, %v244
    %v246 = vpop.f32.mrb[0].mxu0
    %247 = vmatprep.mubr.f32.mxu0 0.0
    %248 = vmatmul.mubr.f32.gmra.mrb[0].mxu0 %v110
    %v249 = vpop.f32.mrb[0].mxu0
    %v250 = vadd.f32 0.0, %v249
    %v251 = vpop.f32.mrb[0].mxu0
    %252 = vmatprep.mubr.f32.mxu0 0.0
    %253 = vmatmul.mubr.f32.gmra.mrb[0].mxu0 %v113
    %v254 = vpop.f32.mrb[0].mxu0
    %v255 = vadd.f32 0.0, %v254
    %v256 = vpop.f32.mrb[0].mxu0
    %257 = vmatprep.mubr.f32.mxu0 0.0
    %258 = vmatmul.mubr.f32.gmra.mrb[0].mxu0 %v116
    %v259 = vpop.f32.mrb[0].mxu0
    %v260 = vadd.f32 0.0, %v259
    %v261 = vpop.f32.mrb[0].mxu0
    %262 = vdwg.mxu0
    %v264 = vsel %vm69, %v21, 0
    %v267 = vsel %vm69, %v22, 0
    %v270 = vsel %vm69, %v23, 0
    %v273 = vsel %vm69, %v24, 0
    %v276 = vsel %vm69, %v25, 0
    %v279 = vsel %vm69, %v26, 0
    %v282 = vsel %vm69, %v27, 0
    %v285 = vsel %vm69, %v28, 0
    %v288 = vsel %vm69, %v29, 0
    %v291 = vsel %vm69, %v30, 0
    %v294 = vsel %vm69, %v31, 0
    %v297 = vsel %vm69, %v32, 0
    %v300 = vsel %vm69, %v33, 0
    %v303 = vsel %vm69, %v34, 0
    %v306 = vsel %vm69, %v35, 0
    %v309 = vsel %vm69, %v36, 0
    %311 = vmatprep.subr.mxu0 0.0
    %312 = vmatpush1.msra.mxu0 %v37
    %313 = vmatprep.subr.mxu0 0.0
    %314 = vmatpush1.msra.mxu0 %v38
    %315 = vmatprep.subr.mxu0 0.0
    %316 = vmatpush1.msra.mxu0 %v39
    %317 = vmatprep.subr.mxu0 0.0
    %318 = vmatpush1.msra.mxu0 %v40
    %319 = vmatprep.subr.mxu0 0.0
    %320 = vmatpush1.msra.mxu0 %v41
    %321 = vmatprep.subr.mxu0 0.0
    %322 = vmatpush1.msra.mxu0 %v42
    %323 = vmatprep.subr.mxu0 0.0
    %324 = vmatpush1.msra.mxu0 %v43
    %325 = vmatprep.subr.mxu0 0.0
    %326 = vmatpush1.msra.mxu0 %v44
    %327 = vmatprep.subr.mxu0 0.0
    %328 = vmatpush1.msra.mxu0 0.0
    %329 = vmatprep.subr.mxu0 0.0
    %330 = vmatpush1.msra.mxu0 0.0
    %331 = vmatprep.subr.mxu0 0.0
    %332 = vmatpush1.msra.mxu0 0.0
    %333 = vmatprep.subr.mxu0 0.0
    %334 = vmatpush1.msra.mxu0 0.0
    %335 = vmatprep.subr.mxu0 0.0
    %336 = vmatpush1.msra.mxu0 0.0
    %337 = vmatprep.subr.mxu0 0.0
    %338 = vmatpush1.msra.mxu0 0.0
    %339 = vmatprep.subr.mxu0 0.0
    %340 = vmatpush1.msra.mxu0 0.0
    %341 = vmatprep.subr.mxu0 0.0
    %342 = vmatpush1.msra.mxu0 0.0
    %343 = vmatprep.subr.mxu0 0.0
    %344 = vmatpush1.msra.mxu0 0.0
    %345 = vmatprep.subr.mxu0 0.0
    %346 = vmatpush1.msra.mxu0 0.0
    %347 = vmatprep.subr.mxu0 0.0
    %348 = vmatpush1.msra.mxu0 0.0
    %349 = vmatprep.subr.mxu0 0.0
    %350 = vmatpush1.msra.mxu0 0.0
    %351 = vmatprep.subr.mxu0 0.0
    %352 = vmatpush1.msra.mxu0 0.0
    %353 = vmatprep.subr.mxu0 0.0
    %354 = vmatpush1.msra.mxu0 0.0
    %355 = vmatprep.subr.mxu0 0.0
    %356 = vmatpush1.msra.mxu0 0.0
    %357 = vmatprep.subr.mxu0 0.0
    %358 = vmatpush1.msra.mxu0 0.0
    %359 = vmatprep.subr.mxu0 0.0
    %360 = vmatpush1.msra.mxu0 0.0
    %361 = vmatprep.subr.mxu0 0.0
    %362 = vmatpush1.msra.mxu0 0.0
    %363 = vmatprep.subr.mxu0 0.0
    %364 = vmatpush1.msra.mxu0 0.0
    %365 = vmatprep.subr.mxu0 0.0
    %366 = vmatpush1.msra.mxu0 0.0
    %367 = vmatprep.subr.mxu0 0.0
    %368 = vmatpush1.msra.mxu0 0.0
    %369 = vmatprep.subr.mxu0 0.0
    %370 = vmatpush1.msra.mxu0 0.0
    %371 = vmatprep.subr.mxu0 0.0
    %372 = vmatpush1.msra.mxu0 0.0
    %373 = vmatprep.subr.mxu0 0.0
    %374 = vmatpush1.msra.mxu0 0.0
    %375 = vmatprep.mubr.f32.mxu0 0.0
    %376 = vmatmul.mubr.f32.gmra.mrb[0].mxu0 %v264
    %v377 = vpop.f32.mrb[0].mxu0
    %v378 = vadd.f32 %v185, %v377
    %v379 = vpop.f32.mrb[0].mxu0
    %380 = vmatprep.mubr.f32.mxu0 0.0
    %381 = vmatmul.mubr.f32.gmra.mrb[0].mxu0 %v267
    %v382 = vpop.f32.mrb[0].mxu0
    %v383 = vadd.f32 %v190, %v382
    %v384 = vpop.f32.mrb[0].mxu0
    %385 = vmatprep.mubr.f32.mxu0 0.0
    %386 = vmatmul.mubr.f32.gmra.mrb[0].mxu0 %v270
    %v387 = vpop.f32.mrb[0].mxu0
    %v388 = vadd.f32 %v195, %v387
    %v389 = vpop.f32.mrb[0].mxu0
    %390 = vmatprep.mubr.f32.mxu0 0.0
    %391 = vmatmul.mubr.f32.gmra.mrb[0].mxu0 %v273
    %v392 = vpop.f32.mrb[0].mxu0
    %v393 = vadd.f32 %v200, %v392
    %v394 = vpop.f32.mrb[0].mxu0
    %395 = vmatprep.mubr.f32.mxu0 0.0
    %396 = vmatmul.mubr.f32.gmra.mrb[0].mxu0 %v276
    %v397 = vpop.f32.mrb[0].mxu0
    %v398 = vadd.f32 %v205, %v397
    %v399 = vpop.f32.mrb[0].mxu0
    %400 = vmatprep.mubr.f32.mxu0 0.0
    %401 = vmatmul.mubr.f32.gmra.mrb[0].mxu0 %v279
    %v402 = vpop.f32.mrb[0].mxu0
    %v403 = vadd.f32 %v210, %v402
    %v404 = vpop.f32.mrb[0].mxu0
    %405 = vmatprep.mubr.f32.mxu0 0.0
    %406 = vmatmul.mubr.f32.gmra.mrb[0].mxu0 %v282
    %v407 = vpop.f32.mrb[0].mxu0
    %v408 = vadd.f32 %v215, %v407
    %v409 = vpop.f32.mrb[0].mxu0
    %410 = vmatprep.mubr.f32.mxu0 0.0
    %411 = vmatmul.mubr.f32.gmra.mrb[0].mxu0 %v285
    %v412 = vpop.f32.mrb[0].mxu0
    %v413 = vadd.f32 %v220, %v412
    %v414 = vpop.f32.mrb[0].mxu0
    %415 = vmatprep.mubr.f32.mxu0 0.0
    %416 = vmatmul.mubr.f32.gmra.mrb[0].mxu0 %v288
    %v417 = vpop.f32.mrb[0].mxu0
    %v418 = vadd.f32 %v225, %v417
    %v419 = vpop.f32.mrb[0].mxu0
    %420 = vmatprep.mubr.f32.mxu0 0.0
    %421 = vmatmul.mubr.f32.gmra.mrb[0].mxu0 %v291
    %v422 = vpop.f32.mrb[0].mxu0
    %v423 = vadd.f32 %v230, %v422
    %v424 = vpop.f32.mrb[0].mxu0
    %425 = vmatprep.mubr.f32.mxu0 0.0
    %426 = vmatmul.mubr.f32.gmra.mrb[0].mxu0 %v294
    %v427 = vpop.f32.mrb[0].mxu0
    %v428 = vadd.f32 %v235, %v427
    %v429 = vpop.f32.mrb[0].mxu0
    %430 = vmatprep.mubr.f32.mxu0 0.0
    %431 = vmatmul.mubr.f32.gmra.mrb[0].mxu0 %v297
    %v432 = vpop.f32.mrb[0].mxu0
    %v433 = vadd.f32 %v240, %v432
    %v434 = vpop.f32.mrb[0].mxu0
    %435 = vmatprep.mubr.f32.mxu0 0.0
    %436 = vmatmul.mubr.f32.gmra.mrb[0].mxu0 %v300
    %v437 = vpop.f32.mrb[0].mxu0
    %v438 = vadd.f32 %v245, %v437
    %v439 = vpop.f32.mrb[0].mxu0
    %440 = vmatprep.mubr.f32.mxu0 0.0
    %441 = vmatmul.mubr.f32.gmra.mrb[0].mxu0 %v303
    %v442 = vpop.f32.mrb[0].mxu0
    %v443 = vadd.f32 %v250, %v442
    %v444 = vpop.f32.mrb[0].mxu0
    %445 = vmatprep.mubr.f32.mxu0 0.0
    %446 = vmatmul.mubr.f32.gmra.mrb[0].mxu0 %v306
    %v447 = vpop.f32.mrb[0].mxu0
    %v448 = vadd.f32 %v255, %v447
    %v449 = vpop.f32.mrb[0].mxu0
    %450 = vmatprep.mubr.f32.mxu0 0.0
    %451 = vmatmul.mubr.f32.gmra.mrb[0].mxu0 %v309
    %v452 = vpop.f32.mrb[0].mxu0
    %v453 = vadd.f32 %v260, %v452
    %v454 = vpop.f32.mrb[0].mxu0
    %455 = vdwg.mxu0
    %v456 = vld [vmem:[%s4] sm:$0x1]
    %v458 = vlaneseq
    %v459 = vshrl.u32 %v458, 7
    %v460 = vsub.s32 0, %v459
    %v461 = vrot.slane %v456, %v460
    %v463 = vadd.f32 %v378, %v461
    %v464 = vadd.f32 %v383, %v461
    %v465 = vadd.f32 %v388, %v461
    %v466 = vadd.f32 %v393, %v461
    %v467 = vadd.f32 %v398, %v461
    %v468 = vadd.f32 %v403, %v461
    %v469 = vadd.f32 %v408, %v461
    %v470 = vadd.f32 %v413, %v461
    %v471 = vadd.f32 %v418, %v461
    %v472 = vadd.f32 %v423, %v461
    %v473 = vadd.f32 %v428, %v461
    %v474 = vadd.f32 %v433, %v461
    %v475 = vadd.f32 %v438, %v461
    %v476 = vadd.f32 %v443, %v461
    %v477 = vadd.f32 %v448, %v461
    %v478 = vadd.f32 %v453, %v461
    %v479 = vmax.f32 %v463, 0.0
    %v480 = vmax.f32 %v464, 0.0
    %v481 = vmax.f32 %v465, 0.0
    %v482 = vmax.f32 %v466, 0.0
    %v483 = vmax.f32 %v467, 0.0
    %v484 = vmax.f32 %v468, 0.0
    %v485 = vmax.f32 %v469, 0.0
    %v486 = vmax.f32 %v470, 0.0
    %v487 = vmax.f32 %v471, 0.0
    %v488 = vmax.f32 %v472, 0.0
    %v489 = vmax.f32 %v473, 0.0
    %v490 = vmax.f32 %v474, 0.0
    %v491 = vmax.f32 %v475, 0.0
    %v492 = vmax.f32 %v476, 0.0
    %v493 = vmax.f32 %v477, 0.0
    %v494 = vmax.f32 %v478, 0.0
    %495 = vst [vmem:[#allocation2] sm:$0xff] %v479
    %496 = vst [vmem:[#allocation2 + $0x8] sm:$0xff] %v480
    %497 = vst [vmem:[#allocation2 + $0x10] sm:$0xff] %v481
    %498 = vst [vmem:[#allocation2 + $0x18] sm:$0xff] %v482
    %499 = vst [vmem:[#allocation2 + $0x20] sm:$0xff] %v483
    %500 = vst [vmem:[#allocation2 + $0x28] sm:$0xff] %v484
    %501 = vst [vmem:[#allocation2 + $0x30] sm:$0xff] %v485
    %502 = vst [vmem:[#allocation2 + $0x38] sm:$0xff] %v486
    %503 = vst [vmem:[#allocation2 + $0x40] sm:$0xff] %v487
    %504 = vst [vmem:[#allocation2 + $0x48] sm:$0xff] %v488
    %505 = vst [vmem:[#allocation2 + $0x50] sm:$0xff] %v489
    %506 = vst [vmem:[#allocation2 + $0x58] sm:$0xff] %v490
    %507 = vst [vmem:[#allocation2 + $0x60] sm:$0xff] %v491
    %508 = vst [vmem:[#allocation2 + $0x68] sm:$0xff] %v492
    %509 = vst [vmem:[#allocation2 + $0x70] sm:$0xff] %v493
    %510 = vst [vmem:[#allocation2 + $0x78] sm:$0xff] %v494
    // Predicated region
    $region22: #{tpu_custom_call.1} parent=1 // pred_check
      _
    $region23: #{tpu_custom_call.1} parent=1 // pred_check_branch
      %512 = sbr.rel (0) target = $region25
    $region24: #{tpu_custom_call.1} parent=1 // pred_region
      %s514 = ssub.s32 2048, 2048
      %515 = vsyncadd [#allocation3], %s514
      %s516 = sshll.u32 [#allocation2], 4
      %s517 = int_to_ptr.vmem [resolvable:$true] %s516
      %522 = dma.vmem_to_hbm [thread:$0]  %s517, 2048, %s5, [#allocation3], 128, 128, 8
    $region25: #{tpu_custom_call.1} parent=1 // pred_fallthru
      _
    // Predicated region
    $region26: #{tpu_custom_call.1} parent=1 // pred_check
      _
    $region27: #{tpu_custom_call.1} parent=1 // pred_check_branch
      %524 = sbr.rel (0) target = $region29
    $region28: #{tpu_custom_call.1} parent=1 // pred_region
      %525 = dma.done [#allocation3], 2048
    $region29: #{tpu_custom_call.1} parent=1 // pred_fallthru
      _
    %526 = vsyncpa [#allocation3], 1

</llo_original>
